<compile_context>
chip_gen: v6e
topology: v6e:2x2x1
jax: 0.10.0
libtpu: 0.0.40
codegen_flags: <defaults>
</compile_context>

<pallas_src>
import jax
import jax.numpy as jnp
from jax.experimental import pallas as pl
from jax.experimental.pallas import tpu as pltpu


def _pos_emb_kernel(w_ref, out_ref):
    # w_ref   : (R, F)      -- full embedding table (R = 8 packed rows or 1),
    #                          VMEM-resident across the whole grid.
    # out_ref : (TB * R, F) -- batch tile of the flattened output.
    if w_ref.shape[0] == 1:
        out_ref[...] = jnp.broadcast_to(w_ref[...], out_ref.shape)
    else:
        reps = out_ref.shape[0] // w_ref.shape[0]
        out_ref[...] = jnp.tile(w_ref[...], (reps, 1))


def _sublane_pack(itemsize: int) -> int:
    # Minimum dense sublane multiple per dtype width (f32:8, bf16:16, int8/fp8:32).
    return {4: 8, 2: 16, 1: 32}.get(itemsize, 8)


def positional_embedding(weight: jax.Array, batch_size: int) -> jax.Array:
    """Replicates the embedding weight across the batch dimension.

    weight: (max_len, d_model)
    returns: (batch_size, max_len, d_model)
    """
    max_len, d_model = weight.shape
    feat = max_len * d_model
    itemsize = weight.dtype.itemsize
    pack = _sublane_pack(itemsize)

    # ---- table layout -----------------------------------------------------
    # Fold the flat feature row into 8 sublane rows when it stays lane-dense
    # (feat//8 multiple of 128) to avoid 1->8 sublane padding of the table.
    rows = 8 if (feat % (8 * 128) == 0) else 1
    fcols = feat // rows
    w2d = weight.reshape(rows, fcols)            # free row-major reshape

    # ---- VMEM / tile budget -------------------------------------------------
    row_bytes = feat * itemsize                  # bytes written per batch row
    pad_rows = -(-rows // pack) * pack           # padded table footprint in VMEM
    pad_cols = -(-fcols // 128) * 128
    table_vmem = pad_rows * pad_cols * itemsize  # single-buffered (Buffered(1))

    vmem_budget = 40 << 20                       # conservative across v5e/v6e/v7x
    headroom = 2 << 20
    target_tile_bytes = 8 << 20                  # ~8 MiB output tiles
    max_tile_bytes = max(row_bytes, (vmem_budget - table_vmem - headroom) // 2)
    tile_bytes = min(target_tile_bytes, max_tile_bytes)

    # ---- batch-tile selection (dtype-aware sublane rounding) ----------------
    # Output block sublane dim is TB*rows; keep it a multiple of the dtype's
    # sublane pack unless TB equals the full batch (full-dim blocks are exempt).
    gran = max(1, -(-pack // rows))              # batch rows per dense sublane group
    tb = max(gran, (tile_bytes // max(row_bytes, 1)) // gran * gran)
    tb = min(tb, batch_size)
    if tb < batch_size:
        tb = max(gran, tb // gran * gran)

    # v7x has 2 TensorCores: keep >= 2 grid steps so both stream writes.
    # Single-TC chips (v5e/v6e) take the largest tile (no halving clamp).
    try:
        multi_tc = "v7" in jax.devices()[0].device_kind.lower()
    except Exception:  # best-effort detection only
        multi_tc = False
    if multi_tc and batch_size >= 2 * gran and pl.cdiv(batch_size, tb) < 2:
        tb = max(gran, (batch_size // 2) // gran * gran)

    grid = (pl.cdiv(batch_size, tb),)
    out_tile_bytes = tb * row_bytes
    vmem_need = 2 * out_tile_bytes + table_vmem + headroom     # dbl-buffered out
    vmem_limit = int(min(max(vmem_need, 16 << 20), 48 << 20))

    out2d = pl.pallas_call(
        _pos_emb_kernel,
        out_shape=jax.ShapeDtypeStruct((batch_size * rows, fcols), weight.dtype),
        grid_spec=pltpu.PrefetchScalarGridSpec(
            num_scalar_prefetch=0,
            grid=grid,
            in_specs=[
                # Full table; constant index_map keeps it resident in VMEM
                # across all grid steps; single-buffered (read once from HBM).
                pl.BlockSpec((rows, fcols), lambda b: (0, 0),
                             pipeline_mode=pl.Buffered(1)),
            ],
            # Batch-tiled, lane-dense output block.
            out_specs=pl.BlockSpec((tb * rows, fcols), lambda b: (b, 0)),
        ),
        compiler_params=pltpu.CompilerParams(
            dimension_semantics=("parallel",),
            vmem_limit_bytes=vmem_limit,
        ),
        cost_estimate=pl.CostEstimate(
            flops=0,
            transcendentals=0,
            bytes_accessed=batch_size * feat * itemsize + feat * itemsize,
        ),
    )(w2d)

    # Free row-major reshape back to the module's output layout.
    return out2d.reshape(batch_size, max_len, d_model)


if __name__ == "__main__":
    # Small shapes consistent with the module: max_len (seq) = 8, d_model = 32.
    batch_size = 2
    max_len = 8
    d_model = 32

    key = jax.random.PRNGKey(0)
    # nn.Embedding default init ~ N(0, 1)
    pe_weight = jax.random.normal(key, (max_len, d_model), dtype=jnp.float32)

    # "x" in the original forward is only used for its batch size.
    x = jax.random.normal(jax.random.fold_in(key, 1), (batch_size, max_len),
                          dtype=jnp.float32)

    out = positional_embedding(pe_weight, x.shape[0])
    out = jax.block_until_ready(out)

    # Reference check (pure JAX): broadcast weight across batch.
    ref = jnp.broadcast_to(pe_weight[None, :, :], (batch_size, max_len, d_model))
    assert out.shape == (batch_size, max_len, d_model)
    assert jnp.array_equal(out, ref)

    print("KERNEL_OK")
</pallas_src>

<mosaic_0001>
module attributes {stable_mosaic.version = 11 : i64} {
  func.func @_pos_emb_kernel(%arg0: i32, %arg1: memref<1x256xf32, #tpu.memory_space<vmem>>, %arg2: memref<2x256xf32, #tpu.memory_space<vmem>>) attributes {dimension_semantics = [#tpu.dimension_semantics<parallel>], iteration_bounds = array<i64: 1>, scalar_prefetch = 0 : i64, scratch_operands = 0 : i64, tpu.core_type = #tpu.core_type<tc>, window_params = [{pipeline_mode = #tpu.pipeline_mode<synchronous>, transform_indices = @transform_0, window_bounds = array<i64: 1, 256>}, {transform_indices = @transform_1, window_bounds = array<i64: 2, 256>}]} {
    %c0 = arith.constant 0 : index
    %c0_0 = arith.constant 0 : index
    %0 = vector.load %arg1[%c0, %c0_0] : memref<1x256xf32, #tpu.memory_space<vmem>>, vector<1x256xf32>
    %1 = vector.shape_cast %0 : vector<1x256xf32> to vector<1x256xf32>
    %2 = vector.broadcast %1 : vector<1x256xf32> to vector<2x256xf32>
    %c0_1 = arith.constant 0 : index
    %c0_2 = arith.constant 0 : index
    %3 = vector.load %arg2[%c0_1, %c0_2] : memref<2x256xf32, #tpu.memory_space<vmem>>, vector<2x256xf32>
    tpu.vector_store %arg2[%c0_1, %c0_2], %2 {strides = array<i32>} : memref<2x256xf32, #tpu.memory_space<vmem>>, vector<2x256xf32>,
    return
  }
  func.func @transform_0(%arg0: i32) -> (i32, i32) {
    %c0_i32 = arith.constant 0 : i32
    %c0_i32_0 = arith.constant 0 : i32
    %c0_i32_1 = arith.constant 0 : i32
    return %c0_i32, %c0_i32_0 : i32, i32
  }
  func.func @transform_1(%arg0: i32) -> (i32, i32) {
    %c0_i32 = arith.constant 0 : i32
    %c0_i32_0 = arith.constant 0 : i32
    return %arg0, %c0_i32 : i32, i32
  }
}

</mosaic_0001>

<llo_original>
// kernel: tpu_custom_call.1
$region0: #{tpu_custom_call.1}
  #allocation0 [shape = 'u32[]', space=smem, size = 0x4, offset = 0x4, fixed_abs, tag = 'smem constant byte address 0x4 - core index']
  #allocation1 [shape = 'u32[144,128]{1,0:T(1,128)}', space=vmem, size = 0x12000, scoped, tag = 'internal scratch']
  %s0 = inlined_call_operand.hbm [shape: f32[1,256], index: 0, kind: input, shape index: {}]
  %s1 = inlined_call_operand.hbm [shape: f32[2,256], index: 1, kind: output, shape index: {}]
  %s2 = sld [smem:[#allocation0]]
  $region18: #{tpu_custom_call.1} parent=0
    _
  %s4 = ssub.s32 1, %s2
  %s5 = scalar_select 0, %s4, %s2
  $region1: #{tpu_custom_call.1} parent=0
    #allocation2 [shape = 'u8[1024]{0}', space=vmem, size = 0x400, scoped, tag = 'input window, operand 0, single buffered']
    #allocation3 [shape = 's32[1]{0}', space=sflag, size = 0x4, scoped, tag = 'scoped memory for tpu_custom_call.1']
    #allocation4 [shape = 's32[1]{0}', space=sflag, size = 0x4, scoped, tag = 'scoped memory for tpu_custom_call.1']
    #allocation5 [shape = 'u8[2048]{0}', space=vmem, size = 0x800, scoped, tag = 'output window, operand 0, single buffered']
    %6 = vsyncpa [#allocation3], 0
    %7 = vsyncpa [#allocation4], 0
    // Predicated region
    $region2: #{tpu_custom_call.1} parent=1 // pred_check
      _
    $region3: #{tpu_custom_call.1} parent=1 // pred_check_branch
      %9 = sbr.rel (0) target = $region5
    $region4: #{tpu_custom_call.1} parent=1 // pred_region
      %s11 = ssub.s32 32, 32
      %12 = vsyncadd [#allocation3], %s11
      %s14 = sshll.u32 [#allocation2], 4
      %s15 = int_to_ptr.vmem [resolvable:$true] %s14
      %17 = dma.hbm_to_vmem [thread:$0]  %s0, 32, %s15, [#allocation3]
    $region5: #{tpu_custom_call.1} parent=1 // pred_fallthru
      _
    // Predicated region
    $region6: #{tpu_custom_call.1} parent=1 // pred_check
      _
    $region7: #{tpu_custom_call.1} parent=1 // pred_check_branch
      %19 = sbr.rel (0) target = $region9
    $region8: #{tpu_custom_call.1} parent=1 // pred_region
      %20 = dma.done [#allocation3], 32
    $region9: #{tpu_custom_call.1} parent=1 // pred_fallthru
      _
    %v21 = vld [vmem:[#allocation2] sm:$0x3]
    %v23 = vlaneseq
    %v24 = vshrl.u32 %v23, 7
    %v25 = vsub.s32 0, %v24
    %v26 = vrot.slane %v21, %v25
    %v27 = vlaneseq
    %v28 = vshrl.u32 %v27, 7
    %v29 = vsub.s32 1, %v28
    %v30 = vrot.slane %v21, %v29
    %v31 = vcombine.low %v26, %v30
    %v33 = vunpack.c.l.s4 1983009808
    %v34 = vunpack.c.0.s8 %v33
    %v35 = vlaneseq
    %v36 = vshrl.u32 %v35, 7
    %v37 = vsub.s32 %v34, %v36
    %v38 = vrot.slane %v31, %v37
    %40 = vst [vmem:[#allocation5] sm:$0xf] %v38
    // Predicated region
    $region10: #{tpu_custom_call.1} parent=1 // pred_check
      _
    $region11: #{tpu_custom_call.1} parent=1 // pred_check_branch
      %42 = sbr.rel (0) target = $region13
    $region12: #{tpu_custom_call.1} parent=1 // pred_region
      %s44 = ssub.s32 64, 64
      %45 = vsyncadd [#allocation4], %s44
      %s47 = sshll.u32 [#allocation5], 4
      %s48 = int_to_ptr.vmem [resolvable:$true] %s47
      %50 = dma.vmem_to_hbm [thread:$0]  %s48, 64, %s1, [#allocation4]
    $region13: #{tpu_custom_call.1} parent=1 // pred_fallthru
      _
    // Predicated region
    $region14: #{tpu_custom_call.1} parent=1 // pred_check
      _
    $region15: #{tpu_custom_call.1} parent=1 // pred_check_branch
      %52 = sbr.rel (0) target = $region17
    $region16: #{tpu_custom_call.1} parent=1 // pred_region
      %53 = dma.done [#allocation4], 64
    $region17: #{tpu_custom_call.1} parent=1 // pred_fallthru
      _
    %54 = vsyncpa [#allocation3], 1
    %55 = vsyncpa [#allocation4], 1

</llo_original>
